<compile_context>
chip_gen: v5e
topology: v5e:2x2
jax: 0.10.0
libtpu: 0.0.40
codegen_flags: <defaults>
</compile_context>

<pallas_src>
import functools

import jax
import jax.numpy as jnp
from jax.experimental import pallas as pl
from jax.experimental.pallas import tpu as pltpu


# ----------------------------------------------------------------------------
# Pallas kernel: fused 3-layer MLP + masked squared-error partial sum per tile
# ----------------------------------------------------------------------------
def icm_kernel(x1_ref, x2_ref, a_ref,
               w1a_ref, w1b_ref, b1_ref, w2_ref, b2_ref, w3_ref, b3_ref,
               out_ref, *, batch_size, tile_b):
    i = pl.program_id(0)

    x1 = x1_ref[...].astype(jnp.float32)
    x2 = x2_ref[...].astype(jnp.float32)

    # Layer 1: concat fused into two matmuls against the split first-layer weight.
    h1 = (jnp.dot(x1, w1a_ref[...], preferred_element_type=jnp.float32)
          + jnp.dot(x2, w1b_ref[...], preferred_element_type=jnp.float32)
          + b1_ref[...])
    h1 = jnp.maximum(h1, 0.0)

    h2 = jnp.dot(h1, w2_ref[...], preferred_element_type=jnp.float32) + b2_ref[...]
    h2 = jnp.maximum(h2, 0.0)

    pred = jnp.dot(h2, w3_ref[...], preferred_element_type=jnp.float32) + b3_ref[...]

    diff = a_ref[...].astype(jnp.float32) - pred

    # Mask rows beyond the true batch (tail tile): select 0.0 so padded/garbage rows
    # (possibly NaN/Inf) never reach the reduction.
    row = i * tile_b + jax.lax.broadcasted_iota(jnp.int32, diff.shape, 0)
    d2 = jnp.where(row < batch_size, diff * diff, 0.0)

    partial = jnp.sum(d2)
    # Lane-dense, unmasked (8,128) store; every element of the tile's block holds the
    # same partial sum.  The wrapper reads one element per tile.
    out_ref[...] = jnp.full(out_ref.shape, partial, dtype=out_ref.dtype)


def icm_loss(backward_rep, action, next_backward_rep, params, *, tile_b=512):
    """Batch-tiled, pipelined ICM loss.  Mean divisor is always the full B*action_dim."""
    B, z_dim = backward_rep.shape
    action_dim = action.shape[-1]
    w1, b1, w2, b2, w3, b3 = params
    hidden_dim = w1.shape[1]

    # Split the first-layer weight so the (B, 2*z_dim) concat never materializes in HBM.
    w1a = w1[:z_dim]
    w1b = w1[z_dim:]

    # Batch tile: multiple of 8 sublanes, no larger than the (rounded-up) batch.
    # These per-tile activations are tiny (KBs), so this fits the 32 MiB scoped VMEM
    # default comfortably on v5e/v6e/v7x even with double-buffering.
    tile_b = max(8, min(((tile_b + 7) // 8) * 8, ((B + 7) // 8) * 8))
    num_tiles = pl.cdiv(B, tile_b)

    kernel = functools.partial(icm_kernel, batch_size=B, tile_b=tile_b)

    flops = 2 * B * (2 * z_dim * hidden_dim
                     + hidden_dim * hidden_dim
                     + hidden_dim * action_dim)
    bytes_accessed = 4 * (B * (2 * z_dim + action_dim)                 # batch streams
                          + 2 * z_dim * hidden_dim + hidden_dim * hidden_dim
                          + hidden_dim * action_dim
                          + 2 * hidden_dim + action_dim                # weights + biases
                          + num_tiles * 8 * 128)                       # partial-sum output

    grid_spec = pltpu.PrefetchScalarGridSpec(
        num_scalar_prefetch=0,
        grid=(num_tiles,),
        in_specs=[
            pl.BlockSpec((tile_b, z_dim), lambda i: (i, 0)),       # backward_rep tile
            pl.BlockSpec((tile_b, z_dim), lambda i: (i, 0)),       # next_backward_rep tile
            pl.BlockSpec((tile_b, action_dim), lambda i: (i, 0)),  # action tile
            pl.BlockSpec((z_dim, hidden_dim), lambda i: (0, 0)),   # w1[:z]   (resident)
            pl.BlockSpec((z_dim, hidden_dim), lambda i: (0, 0)),   # w1[z:]   (resident)
            pl.BlockSpec((1, hidden_dim), lambda i: (0, 0)),       # b1       (resident)
            pl.BlockSpec((hidden_dim, hidden_dim), lambda i: (0, 0)),  # w2   (resident)
            pl.BlockSpec((1, hidden_dim), lambda i: (0, 0)),       # b2       (resident)
            pl.BlockSpec((hidden_dim, action_dim), lambda i: (0, 0)),  # w3   (resident)
            pl.BlockSpec((1, action_dim), lambda i: (0, 0)),       # b3       (resident)
        ],
        out_specs=pl.BlockSpec((8, 128), lambda i: (i, 0)),
    )

    partials = pl.pallas_call(
        kernel,
        out_shape=jax.ShapeDtypeStruct((num_tiles * 8, 128), jnp.float32),
        grid_spec=grid_spec,
        compiler_params=pltpu.CompilerParams(
            dimension_semantics=("parallel",)),
        cost_estimate=pl.CostEstimate(flops=flops, transcendentals=0,
                                      bytes_accessed=bytes_accessed),
    )(backward_rep, next_backward_rep, action, w1a, w1b, b1, w2, b2, w3, b3)

    # One element per (8,128) block carries that tile's partial sum.
    tile_sums = partials[::8, 0]
    return jnp.sum(tile_sums) / jnp.float32(B * action_dim)


# ----------------------------------------------------------------------------
# Deterministic parameter init (orthogonal weights, zero biases), like weight_init
# ----------------------------------------------------------------------------
def orthogonal(key, rows, cols, gain=1.0, dtype=jnp.float32):
    """Orthogonal init for a (rows, cols) matrix (semantics of nn.init.orthogonal_)."""
    a = jax.random.normal(key, (max(rows, cols), min(rows, cols)), dtype=jnp.float32)
    q, r = jnp.linalg.qr(a)
    q = q * jnp.sign(jnp.diagonal(r))[None, :]
    if rows < cols:
        q = q.T
    return (gain * q[:rows, :cols]).astype(dtype)


def make_icm_params(key, z_dim, action_dim, hidden_dim):
    k1, k2, k3 = jax.random.split(key, 3)
    in_dim = 2 * z_dim
    # stored as (in, out) = W_pt.T ; orthogonality of W_pt <=> orthogonality of W_pt.T
    w1 = orthogonal(k1, in_dim, hidden_dim)
    w2 = orthogonal(k2, hidden_dim, hidden_dim)
    w3 = orthogonal(k3, hidden_dim, action_dim)
    b1 = jnp.zeros((1, hidden_dim), jnp.float32)
    b2 = jnp.zeros((1, hidden_dim), jnp.float32)
    b3 = jnp.zeros((1, action_dim), jnp.float32)
    return (w1, b1, w2, b2, w3, b3)


# ----------------------------------------------------------------------------
# Pure-JAX reference for sanity check
# ----------------------------------------------------------------------------
def icm_loss_ref(backward_rep, action, next_backward_rep, params):
    w1, b1, w2, b2, w3, b3 = params
    x = jnp.concatenate([backward_rep, next_backward_rep], axis=-1)
    h1 = jnp.maximum(x @ w1 + b1, 0.0)
    h2 = jnp.maximum(h1 @ w2 + b2, 0.0)
    pred = h2 @ w3 + b3
    return jnp.mean((action - pred) ** 2)


if __name__ == "__main__":
    # Small but non-trivial: 4 batch tiles of 64 with a masked tail (200 = 3*64 + 8).
    B, z_dim, action_dim, hidden_dim = 200, 16, 8, 32

    key = jax.random.PRNGKey(0)
    k_b, k_a, k_nb, k_p = jax.random.split(key, 4)

    backward_rep = jax.random.normal(k_b, (B, z_dim), jnp.float32)
    action = jax.random.normal(k_a, (B, action_dim), jnp.float32)
    next_backward_rep = jax.random.normal(k_nb, (B, z_dim), jnp.float32)
    params = make_icm_params(k_p, z_dim, action_dim, hidden_dim)

    loss = icm_loss(backward_rep, action, next_backward_rep, params, tile_b=64)
    loss = jax.block_until_ready(loss)

    ref = icm_loss_ref(backward_rep, action, next_backward_rep, params)
    assert jnp.allclose(loss, ref, rtol=5e-5, atol=5e-5), (loss, ref)

    print("KERNEL_OK")
</pallas_src>

<mosaic_0001>
module attributes {stable_mosaic.version = 11 : i64} {
  func.func @icm_kernel(%arg0: i32, %arg1: memref<64x16xf32, #tpu.memory_space<vmem>>, %arg2: memref<64x16xf32, #tpu.memory_space<vmem>>, %arg3: memref<64x8xf32, #tpu.memory_space<vmem>>, %arg4: memref<16x32xf32, #tpu.memory_space<vmem>>, %arg5: memref<16x32xf32, #tpu.memory_space<vmem>>, %arg6: memref<1x32xf32, #tpu.memory_space<vmem>>, %arg7: memref<32x32xf32, #tpu.memory_space<vmem>>, %arg8: memref<1x32xf32, #tpu.memory_space<vmem>>, %arg9: memref<32x8xf32, #tpu.memory_space<vmem>>, %arg10: memref<1x8xf32, #tpu.memory_space<vmem>>, %arg11: memref<8x128xf32, #tpu.memory_space<vmem>>) attributes {dimension_semantics = [#tpu.dimension_semantics<parallel>], iteration_bounds = array<i64: 4>, scalar_prefetch = 0 : i64, scratch_operands = 0 : i64, tpu.core_type = #tpu.core_type<tc>, window_params = [{transform_indices = @transform_0, window_bounds = array<i64: 64, 16>}, {transform_indices = @transform_1, window_bounds = array<i64: 64, 16>}, {transform_indices = @transform_2, window_bounds = array<i64: 64, 8>}, {pipeline_mode = #tpu.pipeline_mode<synchronous>, transform_indices = @transform_3, window_bounds = array<i64: 16, 32>}, {pipeline_mode = #tpu.pipeline_mode<synchronous>, transform_indices = @transform_4, window_bounds = array<i64: 16, 32>}, {pipeline_mode = #tpu.pipeline_mode<synchronous>, transform_indices = @transform_5, window_bounds = array<i64: 1, 32>}, {pipeline_mode = #tpu.pipeline_mode<synchronous>, transform_indices = @transform_6, window_bounds = array<i64: 32, 32>}, {pipeline_mode = #tpu.pipeline_mode<synchronous>, transform_indices = @transform_7, window_bounds = array<i64: 1, 32>}, {pipeline_mode = #tpu.pipeline_mode<synchronous>, transform_indices = @transform_8, window_bounds = array<i64: 32, 8>}, {pipeline_mode = #tpu.pipeline_mode<synchronous>, transform_indices = @transform_9, window_bounds = array<i64: 1, 8>}, {transform_indices = @transform_10, window_bounds = array<i64: 8, 128>}]} {
    %c0 = arith.constant 0 : index
    %c0_0 = arith.constant 0 : index
    %0 = vector.load %arg1[%c0, %c0_0] : memref<64x16xf32, #tpu.memory_space<vmem>>, vector<64x16xf32>
    %c0_1 = arith.constant 0 : index
    %c0_2 = arith.constant 0 : index
    %1 = vector.load %arg2[%c0_1, %c0_2] : memref<64x16xf32, #tpu.memory_space<vmem>>, vector<64x16xf32>
    %c0_3 = arith.constant 0 : index
    %c0_4 = arith.constant 0 : index
    %2 = vector.load %arg4[%c0_3, %c0_4] : memref<16x32xf32, #tpu.memory_space<vmem>>, vector<16x32xf32>
    %cst = arith.constant dense<0.000000e+00> : vector<64x32xf32>
    %3 = tpu.matmul %0, %2, %cst {dimension_numbers = #tpu.dot_dimension_numbers<[1], [0], [0], [1], [0, 0, 1, 1], [], []>} : vector<64x16xf32>, vector<16x32xf32>, vector<64x32xf32> -> vector<64x32xf32>
    %c0_5 = arith.constant 0 : index
    %c0_6 = arith.constant 0 : index
    %4 = vector.load %arg5[%c0_5, %c0_6] : memref<16x32xf32, #tpu.memory_space<vmem>>, vector<16x32xf32>
    %cst_7 = arith.constant dense<0.000000e+00> : vector<64x32xf32>
    %5 = tpu.matmul %1, %4, %cst_7 {dimension_numbers = #tpu.dot_dimension_numbers<[1], [0], [0], [1], [0, 0, 1, 1], [], []>} : vector<64x16xf32>, vector<16x32xf32>, vector<64x32xf32> -> vector<64x32xf32>
    %6 = arith.addf %3, %5 : vector<64x32xf32>
    %c0_8 = arith.constant 0 : index
    %c0_9 = arith.constant 0 : index
    %7 = vector.load %arg6[%c0_8, %c0_9] : memref<1x32xf32, #tpu.memory_space<vmem>>, vector<1x32xf32>
    %8 = vector.broadcast %7 : vector<1x32xf32> to vector<64x32xf32>
    %9 = arith.addf %6, %8 : vector<64x32xf32>
    %cst_10 = arith.constant 0.000000e+00 : f32
    %10 = vector.broadcast %cst_10 : f32 to vector<64x32xf32>
    %11 = arith.maximumf %9, %10 : vector<64x32xf32>
    %c0_11 = arith.constant 0 : index
    %c0_12 = arith.constant 0 : index
    %12 = vector.load %arg7[%c0_11, %c0_12] : memref<32x32xf32, #tpu.memory_space<vmem>>, vector<32x32xf32>
    %cst_13 = arith.constant dense<0.000000e+00> : vector<64x32xf32>
    %13 = tpu.matmul %11, %12, %cst_13 {dimension_numbers = #tpu.dot_dimension_numbers<[1], [0], [0], [1], [0, 0, 1, 1], [], []>} : vector<64x32xf32>, vector<32x32xf32>, vector<64x32xf32> -> vector<64x32xf32>
    %c0_14 = arith.constant 0 : index
    %c0_15 = arith.constant 0 : index
    %14 = vector.load %arg8[%c0_14, %c0_15] : memref<1x32xf32, #tpu.memory_space<vmem>>, vector<1x32xf32>
    %15 = vector.broadcast %14 : vector<1x32xf32> to vector<64x32xf32>
    %16 = arith.addf %13, %15 : vector<64x32xf32>
    %cst_16 = arith.constant 0.000000e+00 : f32
    %17 = vector.broadcast %cst_16 : f32 to vector<64x32xf32>
    %18 = arith.maximumf %16, %17 : vector<64x32xf32>
    %c0_17 = arith.constant 0 : index
    %c0_18 = arith.constant 0 : index
    %19 = vector.load %arg9[%c0_17, %c0_18] : memref<32x8xf32, #tpu.memory_space<vmem>>, vector<32x8xf32>
    %cst_19 = arith.constant dense<0.000000e+00> : vector<64x8xf32>
    %20 = tpu.matmul %18, %19, %cst_19 {dimension_numbers = #tpu.dot_dimension_numbers<[1], [0], [0], [1], [0, 0, 1, 1], [], []>} : vector<64x32xf32>, vector<32x8xf32>, vector<64x8xf32> -> vector<64x8xf32>
    %c0_20 = arith.constant 0 : index
    %c0_21 = arith.constant 0 : index
    %21 = vector.load %arg10[%c0_20, %c0_21] : memref<1x8xf32, #tpu.memory_space<vmem>>, vector<1x8xf32>
    %22 = vector.broadcast %21 : vector<1x8xf32> to vector<64x8xf32>
    %23 = arith.addf %20, %22 : vector<64x8xf32>
    %c0_22 = arith.constant 0 : index
    %c0_23 = arith.constant 0 : index
    %24 = vector.load %arg3[%c0_22, %c0_23] : memref<64x8xf32, #tpu.memory_space<vmem>>, vector<64x8xf32>
    %25 = arith.subf %24, %23 : vector<64x8xf32>
    %c64_i32 = arith.constant 64 : i32
    %26 = arith.muli %arg0, %c64_i32 : i32
    %27 = tpu.iota {dimensions = array<i32: 0>} : vector<64x8xi32>
    %28 = vector.broadcast %26 : i32 to vector<64x8xi32>
    %29 = arith.addi %28, %27 : vector<64x8xi32>
    %c200_i32 = arith.constant 200 : i32
    %30 = vector.broadcast %c200_i32 : i32 to vector<64x8xi32>
    %31 = arith.cmpi slt, %29, %30 : vector<64x8xi32>
    %32 = arith.mulf %25, %25 : vector<64x8xf32>
    %cst_24 = arith.constant 0.000000e+00 : f32
    %33 = vector.broadcast %cst_24 : f32 to vector<64x8xf32>
    %34 = arith.select %31, %32, %33 : vector<64x8xi1>, vector<64x8xf32>
    %35 = vector.shape_cast %34 : vector<64x8xf32> to vector<1x64x8xf32>
    %cst_25 = arith.constant dense<0.000000e+00> : vector<1xf32>
    %36 = vector.multi_reduction <add>, %35, %cst_25 [1, 2] : vector<1x64x8xf32> to vector<1xf32>
    %37 = vector.shape_cast %36 : vector<1xf32> to vector<1x1x1xf32>
    %38 = vector.extract %37[0, 0, 0] : f32 from vector<1x1x1xf32>
    %39 = vector.broadcast %38 : f32 to vector<8x128xf32>
    %c0_26 = arith.constant 0 : index
    %c0_27 = arith.constant 0 : index
    %40 = vector.load %arg11[%c0_26, %c0_27] : memref<8x128xf32, #tpu.memory_space<vmem>>, vector<8x128xf32>
    tpu.vector_store %arg11[%c0_26, %c0_27], %39 {strides = array<i32>} : memref<8x128xf32, #tpu.memory_space<vmem>>, vector<8x128xf32>,
    return
  }
  func.func @transform_0(%arg0: i32) -> (i32, i32) {
    %c0_i32 = arith.constant 0 : i32
    %c0_i32_0 = arith.constant 0 : i32
    return %arg0, %c0_i32 : i32, i32
  }
  func.func @transform_1(%arg0: i32) -> (i32, i32) {
    %c0_i32 = arith.constant 0 : i32
    %c0_i32_0 = arith.constant 0 : i32
    return %arg0, %c0_i32 : i32, i32
  }
  func.func @transform_2(%arg0: i32) -> (i32, i32) {
    %c0_i32 = arith.constant 0 : i32
    %c0_i32_0 = arith.constant 0 : i32
    return %arg0, %c0_i32 : i32, i32
  }
  func.func @transform_3(%arg0: i32) -> (i32, i32) {
    %c0_i32 = arith.constant 0 : i32
    %c0_i32_0 = arith.constant 0 : i32
    %c0_i32_1 = arith.constant 0 : i32
    return %c0_i32, %c0_i32_0 : i32, i32
  }
  func.func @transform_4(%arg0: i32) -> (i32, i32) {
    %c0_i32 = arith.constant 0 : i32
    %c0_i32_0 = arith.constant 0 : i32
    %c0_i32_1 = arith.constant 0 : i32
    return %c0_i32, %c0_i32_0 : i32, i32
  }
  func.func @transform_5(%arg0: i32) -> (i32, i32) {
    %c0_i32 = arith.constant 0 : i32
    %c0_i32_0 = arith.constant 0 : i32
    %c0_i32_1 = arith.constant 0 : i32
    return %c0_i32, %c0_i32_0 : i32, i32
  }
  func.func @transform_6(%arg0: i32) -> (i32, i32) {
    %c0_i32 = arith.constant 0 : i32
    %c0_i32_0 = arith.constant 0 : i32
    %c0_i32_1 = arith.constant 0 : i32
    return %c0_i32, %c0_i32_0 : i32, i32
  }
  func.func @transform_7(%arg0: i32) -> (i32, i32) {
    %c0_i32 = arith.constant 0 : i32
    %c0_i32_0 = arith.constant 0 : i32
    %c0_i32_1 = arith.constant 0 : i32
    return %c0_i32, %c0_i32_0 : i32, i32
  }
  func.func @transform_8(%arg0: i32) -> (i32, i32) {
    %c0_i32 = arith.constant 0 : i32
    %c0_i32_0 = arith.constant 0 : i32
    %c0_i32_1 = arith.constant 0 : i32
    return %c0_i32, %c0_i32_0 : i32, i32
  }
  func.func @transform_9(%arg0: i32) -> (i32, i32) {
    %c0_i32 = arith.constant 0 : i32
    %c0_i32_0 = arith.constant 0 : i32
    %c0_i32_1 = arith.constant 0 : i32
    return %c0_i32, %c0_i32_0 : i32, i32
  }
  func.func @transform_10(%arg0: i32) -> (i32, i32) {
    %c0_i32 = arith.constant 0 : i32
    %c0_i32_0 = arith.constant 0 : i32
    return %arg0, %c0_i32 : i32, i32
  }
}

</mosaic_0001>

<llo_original>
// kernel: tpu_custom_call.1
$region0: #{tpu_custom_call.1}
  #allocation0 [shape = 'u32[]', space=smem, size = 0x4, offset = 0x4, fixed_abs, tag = 'smem constant byte address 0x4 - core index']
  #allocation1 [shape = 'u32[72,128]{1,0:T(1,128)}', space=vmem, size = 0x9000, scoped, tag = 'internal scratch']
  %s0 = inlined_call_operand.vmem [shape: f32[200,16], index: 0, kind: input, shape index: {}]
  %s1 = inlined_call_operand.vmem [shape: f32[200,16], index: 1, kind: input, shape index: {}]
  %s2 = inlined_call_operand.vmem [shape: f32[200,8], index: 2, kind: input, shape index: {}]
  %s3 = inlined_call_operand.vmem [shape: f32[16,32], index: 3, kind: input, shape index: {}]
  %s4 = inlined_call_operand.vmem [shape: f32[16,32], index: 4, kind: input, shape index: {}]
  %s5 = inlined_call_operand.vmem [shape: f32[1,32], index: 5, kind: input, shape index: {}]
  %s6 = inlined_call_operand.vmem [shape: f32[32,32], index: 6, kind: input, shape index: {}]
  %s7 = inlined_call_operand.vmem [shape: f32[1,32], index: 7, kind: input, shape index: {}]
  %s8 = inlined_call_operand.vmem [shape: f32[32,8], index: 8, kind: input, shape index: {}]
  %s9 = inlined_call_operand.vmem [shape: f32[1,8], index: 9, kind: input, shape index: {}]
  %s10 = inlined_call_operand.hbm [shape: f32[32,128], index: 10, kind: output, shape index: {}]
  %s11 = sld [smem:[#allocation0]]
  $region73: #{tpu_custom_call.1} parent=0
    _
  %s13 = ssub.s32 1, %s11
  %s14 = scalar_select 0, %s13, %s11
  $region1: #{tpu_custom_call.1} parent=0
    #allocation2 [shape = 'u8[8192]{0}', space=vmem, size = 0x2000, scoped, tag = 'output window, operand 0']
    #allocation3 [shape = 's32[2]{0}', space=sflag, size = 0x8, scoped, tag = 'scoped memory for tpu_custom_call.1']
    %15 = vsyncpa [#allocation3], 0
    %s16 = scalar_lea.sflag [#allocation3], 1
    %17 = vsyncpa %s16, 0
    loop: start=0, step=1, limit=6
    $region2: #{tpu_custom_call.1} parent=1 // loop_pre_header
      _
    $region3: #{tpu_custom_call.1} parent=1 // loop_header
      %s19 = sphi 0, %s23
      %p20 = scmp.ge.s32.totalorder %s19, 6
      %s29 = sphi 0, %s31
      %s32 = sphi 0, %s29
      %s33 = sphi 0, %s32
      %s49 = sphi 0, %s33
      %s55 = sphi 0, %s57
      %s58 = sphi 0, %s55
      %s59 = sphi 0, %s58
      %s75 = sphi 0, %s59
      %s81 = sphi 0, %s83
      %s84 = sphi 0, %s81
      %s85 = sphi 0, %s84
      %s101 = sphi 0, %s85
      %s105 = sphi 0, %s105
      %s107 = sphi 0, %s105
      %s108 = sphi 0, %s107
      %s122 = sphi 0, %s108
      %s126 = sphi 0, %s126
      %s128 = sphi 0, %s126
      %s129 = sphi 0, %s128
      %s143 = sphi 0, %s129
      %s147 = sphi 0, %s147
      %s149 = sphi 0, %s147
      %s150 = sphi 0, %s149
      %s164 = sphi 0, %s150
      %s168 = sphi 0, %s168
      %s170 = sphi 0, %s168
      %s171 = sphi 0, %s170
      %s185 = sphi 0, %s171
      %s189 = sphi 0, %s189
      %s191 = sphi 0, %s189
      %s192 = sphi 0, %s191
      %s206 = sphi 0, %s192
      %s210 = sphi 0, %s210
      %s212 = sphi 0, %s210
      %s213 = sphi 0, %s212
      %s227 = sphi 0, %s213
      %s231 = sphi 0, %s231
      %s233 = sphi 0, %s231
      %s234 = sphi 0, %s233
      %s248 = sphi 0, %s234
      %s254 = sphi 0, %s256
      %s257 = sphi 0, %s254
      %s258 = sphi 0, %s257
      %s274 = sphi 0, %s258
    $region4: #{tpu_custom_call.1} parent=1 // loop_header_branch
      %22 = sbr.rel (%p20) target = $region8
    $region5: #{tpu_custom_call.1} parent=1 // loop_body
      %s24 = ssub.s32 %s19, 1
      %s25 = ssub.s32 %s19, 2
      %s26 = sadd.s32 %s19, 1
      %s27 = ssub.s32 %s19, %s26
      %p28 = scmp.eq.s32.totalorder %s27, 0
      %s30 = sadd.s32 %s29, 1
      %s31 = scalar_select %p28, %s29, %s30
      %p34 = pneg %p28
      %p35 = scmp.eq.s32.totalorder %s19, 3
      %p36 = por %p34, %p35
      %p37 = scmp.ne.s32.totalorder %s29, %s32
      %p38 = scmp.eq.s32.totalorder %s19, 0
      %p39 = por %p37, %p38
      %p40 = scmp.ne.s32.totalorder %s29, %s32
      %p41 = scmp.eq.s32.totalorder %s24, 3
      %p42 = por %p40, %p41
      %p43 = scmp.ne.s32.totalorder %s32, %s33
      %p44 = scmp.eq.s32.totalorder %s24, 0
      %p45 = por %p43, %p44
      %p46 = scmp.ne.s32.totalorder %s32, %s33
      %p47 = scmp.eq.s32.totalorder %s25, 3
      %p48 = por %p46, %p47
      %p50 = scmp.ne.s32.totalorder %s33, %s49
      %p51 = scmp.eq.s32.totalorder %s25, 0
      %p52 = por %p50, %p51
      %s53 = ssub.s32 %s19, %s26
      %p54 = scmp.eq.s32.totalorder %s53, 0
      %s56 = sadd.s32 %s55, 1
      %s57 = scalar_select %p54, %s55, %s56
      %p60 = pneg %p54
      %p61 = scmp.eq.s32.totalorder %s19, 3
      %p62 = por %p60, %p61
      %p63 = scmp.ne.s32.totalorder %s55, %s58
      %p64 = scmp.eq.s32.totalorder %s19, 0
      %p65 = por %p63, %p64
      %p66 = scmp.ne.s32.totalorder %s55, %s58
      %p67 = scmp.eq.s32.totalorder %s24, 3
      %p68 = por %p66, %p67
      %p69 = scmp.ne.s32.totalorder %s58, %s59
      %p70 = scmp.eq.s32.totalorder %s24, 0
      %p71 = por %p69, %p70
      %p72 = scmp.ne.s32.totalorder %s58, %s59
      %p73 = scmp.eq.s32.totalorder %s25, 3
      %p74 = por %p72, %p73
      %p76 = scmp.ne.s32.totalorder %s59, %s75
      %p77 = scmp.eq.s32.totalorder %s25, 0
      %p78 = por %p76, %p77
      %s79 = ssub.s32 %s19, %s26
      %p80 = scmp.eq.s32.totalorder %s79, 0
      %s82 = sadd.s32 %s81, 1
      %s83 = scalar_select %p80, %s81, %s82
      %p86 = pneg %p80
      %p87 = scmp.eq.s32.totalorder %s19, 3
      %p88 = por %p86, %p87
      %p89 = scmp.ne.s32.totalorder %s81, %s84
      %p90 = scmp.eq.s32.totalorder %s19, 0
      %p91 = por %p89, %p90
      %p92 = scmp.ne.s32.totalorder %s81, %s84
      %p93 = scmp.eq.s32.totalorder %s24, 3
      %p94 = por %p92, %p93
      %p95 = scmp.ne.s32.totalorder %s84, %s85
      %p96 = scmp.eq.s32.totalorder %s24, 0
      %p97 = por %p95, %p96
      %p98 = scmp.ne.s32.totalorder %s84, %s85
      %p99 = scmp.eq.s32.totalorder %s25, 3
      %p100 = por %p98, %p99
      %p102 = scmp.ne.s32.totalorder %s85, %s101
      %p103 = scmp.eq.s32.totalorder %s25, 0
      %p104 = por %p102, %p103
      %s106 = sadd.s32 %s105, 1
      %p109 = scmp.eq.s32.totalorder %s19, 3
      %p110 = scmp.ne.s32.totalorder %s105, %s107
      %p111 = scmp.eq.s32.totalorder %s19, 0
      %p112 = por %p110, %p111
      %p113 = scmp.ne.s32.totalorder %s105, %s107
      %p114 = scmp.eq.s32.totalorder %s24, 3
      %p115 = por %p113, %p114
      %p116 = scmp.ne.s32.totalorder %s107, %s108
      %p117 = scmp.eq.s32.totalorder %s24, 0
      %p118 = por %p116, %p117
      %p119 = scmp.ne.s32.totalorder %s107, %s108
      %p120 = scmp.eq.s32.totalorder %s25, 3
      %p121 = por %p119, %p120
      %p123 = scmp.ne.s32.totalorder %s108, %s122
      %p124 = scmp.eq.s32.totalorder %s25, 0
      %p125 = por %p123, %p124
      %s127 = sadd.s32 %s126, 1
      %p130 = scmp.eq.s32.totalorder %s19, 3
      %p131 = scmp.ne.s32.totalorder %s126, %s128
      %p132 = scmp.eq.s32.totalorder %s19, 0
      %p133 = por %p131, %p132
      %p134 = scmp.ne.s32.totalorder %s126, %s128
      %p135 = scmp.eq.s32.totalorder %s24, 3
      %p136 = por %p134, %p135
      %p137 = scmp.ne.s32.totalorder %s128, %s129
      %p138 = scmp.eq.s32.totalorder %s24, 0
      %p139 = por %p137, %p138
      %p140 = scmp.ne.s32.totalorder %s128, %s129
      %p141 = scmp.eq.s32.totalorder %s25, 3
      %p142 = por %p140, %p141
      %p144 = scmp.ne.s32.totalorder %s129, %s143
      %p145 = scmp.eq.s32.totalorder %s25, 0
      %p146 = por %p144, %p145
      %s148 = sadd.s32 %s147, 1
      %p151 = scmp.eq.s32.totalorder %s19, 3
      %p152 = scmp.ne.s32.totalorder %s147, %s149
      %p153 = scmp.eq.s32.totalorder %s19, 0
      %p154 = por %p152, %p153
      %p155 = scmp.ne.s32.totalorder %s147, %s149
      %p156 = scmp.eq.s32.totalorder %s24, 3
      %p157 = por %p155, %p156
      %p158 = scmp.ne.s32.totalorder %s149, %s150
      %p159 = scmp.eq.s32.totalorder %s24, 0
      %p160 = por %p158, %p159
      %p161 = scmp.ne.s32.totalorder %s149, %s150
      %p162 = scmp.eq.s32.totalorder %s25, 3
      %p163 = por %p161, %p162
      %p165 = scmp.ne.s32.totalorder %s150, %s164
      %p166 = scmp.eq.s32.totalorder %s25, 0
      %p167 = por %p165, %p166
      %s169 = sadd.s32 %s168, 1
      %p172 = scmp.eq.s32.totalorder %s19, 3
      %p173 = scmp.ne.s32.totalorder %s168, %s170
      %p174 = scmp.eq.s32.totalorder %s19, 0
      %p175 = por %p173, %p174
      %p176 = scmp.ne.s32.totalorder %s168, %s170
      %p177 = scmp.eq.s32.totalorder %s24, 3
      %p178 = por %p176, %p177
      %p179 = scmp.ne.s32.totalorder %s170, %s171
      %p180 = scmp.eq.s32.totalorder %s24, 0
      %p181 = por %p179, %p180
      %p182 = scmp.ne.s32.totalorder %s170, %s171
      %p183 = scmp.eq.s32.totalorder %s25, 3
      %p184 = por %p182, %p183
      %p186 = scmp.ne.s32.totalorder %s171, %s185
      %p187 = scmp.eq.s32.totalorder %s25, 0
      %p188 = por %p186, %p187
      %s190 = sadd.s32 %s189, 1
      %p193 = scmp.eq.s32.totalorder %s19, 3
      %p194 = scmp.ne.s32.totalorder %s189, %s191
      %p195 = scmp.eq.s32.totalorder %s19, 0
      %p196 = por %p194, %p195
      %p197 = scmp.ne.s32.totalorder %s189, %s191
      %p198 = scmp.eq.s32.totalorder %s24, 3
      %p199 = por %p197, %p198
      %p200 = scmp.ne.s32.totalorder %s191, %s192
      %p201 = scmp.eq.s32.totalorder %s24, 0
      %p202 = por %p200, %p201
      %p203 = scmp.ne.s32.totalorder %s191, %s192
      %p204 = scmp.eq.s32.totalorder %s25, 3
      %p205 = por %p203, %p204
      %p207 = scmp.ne.s32.totalorder %s192, %s206
      %p208 = scmp.eq.s32.totalorder %s25, 0
      %p209 = por %p207, %p208
      %s211 = sadd.s32 %s210, 1
      %p214 = scmp.eq.s32.totalorder %s19, 3
      %p215 = scmp.ne.s32.totalorder %s210, %s212
      %p216 = scmp.eq.s32.totalorder %s19, 0
      %p217 = por %p215, %p216
      %p218 = scmp.ne.s32.totalorder %s210, %s212
      %p219 = scmp.eq.s32.totalorder %s24, 3
      %p220 = por %p218, %p219
      %p221 = scmp.ne.s32.totalorder %s212, %s213
      %p222 = scmp.eq.s32.totalorder %s24, 0
      %p223 = por %p221, %p222
      %p224 = scmp.ne.s32.totalorder %s212, %s213
      %p225 = scmp.eq.s32.totalorder %s25, 3
      %p226 = por %p224, %p225
      %p228 = scmp.ne.s32.totalorder %s213, %s227
      %p229 = scmp.eq.s32.totalorder %s25, 0
      %p230 = por %p228, %p229
      %s232 = sadd.s32 %s231, 1
      %p235 = scmp.eq.s32.totalorder %s19, 3
      %p236 = scmp.ne.s32.totalorder %s231, %s233
      %p237 = scmp.eq.s32.totalorder %s19, 0
      %p238 = por %p236, %p237
      %p239 = scmp.ne.s32.totalorder %s231, %s233
      %p240 = scmp.eq.s32.totalorder %s24, 3
      %p241 = por %p239, %p240
      %p242 = scmp.ne.s32.totalorder %s233, %s234
      %p243 = scmp.eq.s32.totalorder %s24, 0
      %p244 = por %p242, %p243
      %p245 = scmp.ne.s32.totalorder %s233, %s234
      %p246 = scmp.eq.s32.totalorder %s25, 3
      %p247 = por %p245, %p246
      %p249 = scmp.ne.s32.totalorder %s234, %s248
      %p250 = scmp.eq.s32.totalorder %s25, 0
      %p251 = por %p249, %p250
      %s252 = ssub.s32 %s19, %s26
      %p253 = scmp.eq.s32.totalorder %s252, 0
      %s255 = sadd.s32 %s254, 1
      %s256 = scalar_select %p253, %s254, %s255
      %p259 = pneg %p253
      %p260 = scmp.eq.s32.totalorder %s19, 3
      %p261 = por %p259, %p260
      %p262 = scmp.ne.s32.totalorder %s254, %s257
      %p263 = scmp.eq.s32.totalorder %s19, 0
      %p264 = por %p262, %p263
      %p265 = scmp.ne.s32.totalorder %s254, %s257
      %p266 = scmp.eq.s32.totalorder %s24, 3
      %p267 = por %p265, %p266
      %p268 = scmp.ne.s32.totalorder %s257, %s258
      %p269 = scmp.eq.s32.totalorder %s24, 0
      %p270 = por %p268, %p269
      %p271 = scmp.ne.s32.totalorder %s257, %s258
      %p272 = scmp.eq.s32.totalorder %s25, 3
      %p273 = por %p271, %p272
      %p275 = scmp.ne.s32.totalorder %s258, %s274
      %p276 = scmp.eq.s32.totalorder %s25, 0
      %p277 = por %p275, %p276
      %p278 = scmp.le.s32.totalorder 1, %s19
      %p279 = scmp.lt.s32.totalorder %s19, 5
      %p280 = pnand %p278, %p279
      %p281 = pneg %p280
      // Predicated region
      $region9: #{tpu_custom_call.1} parent=5 // pred_check
        _
      $region10: #{tpu_custom_call.1} parent=5 // pred_check_branch
        %283 = sbr.rel (%p280) target = $region12
      $region11: #{tpu_custom_call.1} parent=5 // pred_region
        %s284 = ssub.s32 %s19, 1
        // Predicated region
        $region13: #{tpu_custom_call.1} parent=11 // pred_check
          %p285 = pneg %p118
        $region14: #{tpu_custom_call.1} parent=11 // pred_check_branch
          %287 = sbr.rel (%p285) target = $region16
        $region15: #{tpu_custom_call.1} parent=11 // pred_region
          _
        $region16: #{tpu_custom_call.1} parent=11 // pred_fallthru
          _
        // Predicated region
        $region17: #{tpu_custom_call.1} parent=11 // pred_check
          %p288 = pneg %p139
        $region18: #{tpu_custom_call.1} parent=11 // pred_check_branch
          %290 = sbr.rel (%p288) target = $region20
        $region19: #{tpu_custom_call.1} parent=11 // pred_region
          _
        $region20: #{tpu_custom_call.1} parent=11 // pred_fallthru
          _
        // Predicated region
        $region21: #{tpu_custom_call.1} parent=11 // pred_check
          %p291 = pneg %p160
        $region22: #{tpu_custom_call.1} parent=11 // pred_check_branch
          %293 = sbr.rel (%p291) target = $region24
        $region23: #{tpu_custom_call.1} parent=11 // pred_region
          _
        $region24: #{tpu_custom_call.1} parent=11 // pred_fallthru
          _
        // Predicated region
        $region25: #{tpu_custom_call.1} parent=11 // pred_check
          %p294 = pneg %p181
        $region26: #{tpu_custom_call.1} parent=11 // pred_check_branch
          %296 = sbr.rel (%p294) target = $region28
        $region27: #{tpu_custom_call.1} parent=11 // pred_region
          _
        $region28: #{tpu_custom_call.1} parent=11 // pred_fallthru
          _
        // Predicated region
        $region29: #{tpu_custom_call.1} parent=11 // pred_check
          %p297 = pneg %p202
        $region30: #{tpu_custom_call.1} parent=11 // pred_check_branch
          %299 = sbr.rel (%p297) target = $region32
        $region31: #{tpu_custom_call.1} parent=11 // pred_region
          _
        $region32: #{tpu_custom_call.1} parent=11 // pred_fallthru
          _
        // Predicated region
        $region33: #{tpu_custom_call.1} parent=11 // pred_check
          %p300 = pneg %p223
        $region34: #{tpu_custom_call.1} parent=11 // pred_check_branch
          %302 = sbr.rel (%p300) target = $region36
        $region35: #{tpu_custom_call.1} parent=11 // pred_region
          _
        $region36: #{tpu_custom_call.1} parent=11 // pred_fallthru
          _
        // Predicated region
        $region37: #{tpu_custom_call.1} parent=11 // pred_check
          %p303 = pneg %p244
        $region38: #{tpu_custom_call.1} parent=11 // pred_check_branch
          %305 = sbr.rel (%p303) target = $region40
        $region39: #{tpu_custom_call.1} parent=11 // pred_region
          _
        $region40: #{tpu_custom_call.1} parent=11 // pred_fallthru
          _
      $region12: #{tpu_custom_call.1} parent=5 // pred_fallthru
        _
      %p306 = scmp.lt.s32.totalorder %s19, 4
      // Predicated region
      $region41: #{tpu_custom_call.1} parent=5 // pred_check
        %p307 = pneg %p306
      $region42: #{tpu_custom_call.1} parent=5 // pred_check_branch
        %309 = sbr.rel (%p307) target = $region44
      $region43: #{tpu_custom_call.1} parent=5 // pred_region
        // Predicated region
        $region45: #{tpu_custom_call.1} parent=43 // pred_check
          %p310 = pneg %p39
        $region46: #{tpu_custom_call.1} parent=43 // pred_check_branch
          %312 = sbr.rel (%p310) target = $region48
        $region47: #{tpu_custom_call.1} parent=43 // pred_region
          %s313 = smul.u32 8, %s19
          %s314 = ssub.s32 25, %s313
          %p315 = scmp.lt.s32.totalorder %s314, 8
          %s316 = scalar_select %p315, %s314, 8
          %s317 = smul.u32 8, %s316
          %p318 = scmp.lt.s32.totalorder %s313, 24
          %s319 = scalar_select %p318, %s313, 24
          %s320 = smul.addr %s319, 8
          %s321 = scalar_lea.vmem %s0, %s320
          %s322 = smul.u32 8, %s19
          %s323 = ssub.s32 25, %s322
          %p324 = scmp.lt.s32.totalorder %s323, 8
          %s325 = scalar_select %p324, %s323, 8
          %s326 = smul.u32 8, %s325
        $region48: #{tpu_custom_call.1} parent=43 // pred_fallthru
          _
        // Predicated region
        $region49: #{tpu_custom_call.1} parent=43 // pred_check
          %p327 = pneg %p65
        $region50: #{tpu_custom_call.1} parent=43 // pred_check_branch
          %329 = sbr.rel (%p327) target = $region52
        $region51: #{tpu_custom_call.1} parent=43 // pred_region
          %s330 = smul.u32 8, %s19
          %s331 = ssub.s32 25, %s330
          %p332 = scmp.lt.s32.totalorder %s331, 8
          %s333 = scalar_select %p332, %s331, 8
          %s334 = smul.u32 8, %s333
          %p335 = scmp.lt.s32.totalorder %s330, 24
          %s336 = scalar_select %p335, %s330, 24
          %s337 = smul.addr %s336, 8
          %s338 = scalar_lea.vmem %s1, %s337
          %s339 = smul.u32 8, %s19
          %s340 = ssub.s32 25, %s339
          %p341 = scmp.lt.s32.totalorder %s340, 8
          %s342 = scalar_select %p341, %s340, 8
          %s343 = smul.u32 8, %s342
        $region52: #{tpu_custom_call.1} parent=43 // pred_fallthru
          _
        // Predicated region
        $region53: #{tpu_custom_call.1} parent=43 // pred_check
          %p344 = pneg %p91
        $region54: #{tpu_custom_call.1} parent=43 // pred_check_branch
          %346 = sbr.rel (%p344) target = $region56
        $region55: #{tpu_custom_call.1} parent=43 // pred_region
          %s347 = smul.u32 8, %s19
          %s348 = ssub.s32 25, %s347
          %p349 = scmp.lt.s32.totalorder %s348, 8
          %s350 = scalar_select %p349, %s348, 8
          %s351 = smul.u32 8, %s350
          %p352 = scmp.lt.s32.totalorder %s347, 24
          %s353 = scalar_select %p352, %s347, 24
          %s354 = smul.addr %s353, 8
          %s355 = scalar_lea.vmem %s2, %s354
          %s356 = smul.u32 8, %s19
          %s357 = ssub.s32 25, %s356
          %p358 = scmp.lt.s32.totalorder %s357, 8
          %s359 = scalar_select %p358, %s357, 8
          %s360 = smul.u32 8, %s359
        $region56: #{tpu_custom_call.1} parent=43 // pred_fallthru
          _
      $region44: #{tpu_custom_call.1} parent=5 // pred_fallthru
        _
      %p361 = scmp.le.s32.totalorder 1, %s19
      %p362 = scmp.lt.s32.totalorder %s19, 5
      %p363 = pnand %p361, %p362
      %p364 = pneg %p363
      // Predicated region
      $region57: #{tpu_custom_call.1} parent=5 // pred_check
        _
      $region58: #{tpu_custom_call.1} parent=5 // pred_check_branch
        %366 = sbr.rel (%p363) target = $region60
      $region59: #{tpu_custom_call.1} parent=5 // pred_region
        %s367 = ssub.s32 %s19, 1
        %s368 = smul.u32 8, %s24
        %s369 = ssub.s32 25, %s368
        %p370 = scmp.lt.s32.totalorder %s369, 8
        %s371 = scalar_select %p370, %s369, 8
        %s372 = smul.u32 8, %s371
        %p373 = scmp.lt.s32.totalorder %s368, 24
        %s374 = scalar_select %p373, %s368, 24
        %s375 = smul.addr %s374, 8
        %s376 = scalar_lea.vmem %s0, %s375
        %p377 = pneg %p45
        %p378 = pneg %p42
        %s379 = smul.u32 8, %s24
        %s380 = ssub.s32 25, %s379
        %p381 = scmp.lt.s32.totalorder %s380, 8
        %s382 = scalar_select %p381, %s380, 8
        %s383 = smul.u32 8, %s382
        %p384 = scmp.lt.s32.totalorder %s379, 24
        %s385 = scalar_select %p384, %s379, 24
        %s386 = smul.addr %s385, 8
        %s387 = scalar_lea.vmem %s1, %s386
        %p388 = pneg %p71
        %p389 = pneg %p68
        %s390 = smul.u32 8, %s24
        %s391 = ssub.s32 25, %s390
        %p392 = scmp.lt.s32.totalorder %s391, 8
        %s393 = scalar_select %p392, %s391, 8
        %s394 = smul.u32 8, %s393
        %p395 = scmp.lt.s32.totalorder %s390, 24
        %s396 = scalar_select %p395, %s390, 24
        %s397 = smul.addr %s396, 8
        %s398 = scalar_lea.vmem %s2, %s397
        %p399 = pneg %p97
        %p400 = pneg %p94
        %p401 = pneg %p118
        %p402 = pneg %p115
        %p403 = pneg %p139
        %p404 = pneg %p136
        %p405 = pneg %p160
        %p406 = pneg %p157
        %p407 = pneg %p181
        %p408 = pneg %p178
        %p409 = pneg %p202
        %p410 = pneg %p199
        %p411 = pneg %p223
        %p412 = pneg %p220
        %p413 = pneg %p244
        %p414 = pneg %p241
        %p415 = pneg %p270
        %p416 = pneg %p267
        %s417 = sand.u32 %s257, 1
        %s418 = scalar_lea.sflag [#allocation3], %s417
        %s419 = sand.u32 %s257, 1
        %s420 = smul.addr %s419, 8
        %s421 = scalar_lea.vmem [#allocation2], %s420
        %s422 = smul.u32 8, %s24
        %s423 = ssub.s32 25, %s422
        %p424 = scmp.lt.s32.totalorder %s423, 8
        %s425 = scalar_select %p424, %s423, 8
        %s426 = smul.u32 8, %s425
        %p427 = scmp.lt.s32.totalorder %s422, 24
        %s428 = scalar_select %p427, %s422, 24
        %s429 = smul.addr %s428, 8
        %s430 = scalar_lea.vmem %s0, %s429
        %s431 = smul.u32 8, %s24
        %s432 = ssub.s32 25, %s431
        %p433 = scmp.lt.s32.totalorder %s432, 8
        %s434 = scalar_select %p433, %s432, 8
        %s435 = smul.u32 8, %s434
        %s436 = smul.u32 8, %s24
        %s437 = ssub.s32 25, %s436
        %p438 = scmp.lt.s32.totalorder %s437, 8
        %s439 = scalar_select %p438, %s437, 8
        %s440 = smul.u32 8, %s439
        %p441 = scmp.lt.s32.totalorder %s436, 24
        %s442 = scalar_select %p441, %s436, 24
        %s443 = smul.addr %s442, 8
        %s444 = scalar_lea.vmem %s1, %s443
        %s445 = smul.u32 8, %s24
        %s446 = ssub.s32 25, %s445
        %p447 = scmp.lt.s32.totalorder %s446, 8
        %s448 = scalar_select %p447, %s446, 8
        %s449 = smul.u32 8, %s448
        %s450 = smul.u32 8, %s24
        %s451 = ssub.s32 25, %s450
        %p452 = scmp.lt.s32.totalorder %s451, 8
        %s453 = scalar_select %p452, %s451, 8
        %s454 = smul.u32 8, %s453
        %p455 = scmp.lt.s32.totalorder %s450, 24
        %s456 = scalar_select %p455, %s450, 24
        %s457 = smul.addr %s456, 8
        %s458 = scalar_lea.vmem %s2, %s457
        %s459 = smul.u32 8, %s24
        %s460 = ssub.s32 25, %s459
        %p461 = scmp.lt.s32.totalorder %s460, 8
        %s462 = scalar_select %p461, %s460, 8
        %s463 = smul.u32 8, %s462
        %v464 = vld [vmem:[%s430] sm:$0xff]
        %v465 = vld [vmem:[%s430 + $0x8] sm:$0xff]
        %v466 = vld [vmem:[%s430 + $0x10] sm:$0xff]
        %v467 = vld [vmem:[%s430 + $0x18] sm:$0xff]
        %v468 = vld [vmem:[%s430 + $0x20] sm:$0xff]
        %v469 = vld [vmem:[%s430 + $0x28] sm:$0xff]
        %v470 = vld [vmem:[%s430 + $0x30] sm:$0xff]
        %v471 = vld [vmem:[%s430 + $0x38] sm:$0xff]
        %v472 = vld [vmem:[%s444] sm:$0xff]
        %v473 = vld [vmem:[%s444 + $0x8] sm:$0xff]
        %v474 = vld [vmem:[%s444 + $0x10] sm:$0xff]
        %v475 = vld [vmem:[%s444 + $0x18] sm:$0xff]
        %v476 = vld [vmem:[%s444 + $0x20] sm:$0xff]
        %v477 = vld [vmem:[%s444 + $0x28] sm:$0xff]
        %v478 = vld [vmem:[%s444 + $0x30] sm:$0xff]
        %v479 = vld [vmem:[%s444 + $0x38] sm:$0xff]
        %v480 = vld [vmem:[%s3] sm:$0xff]
        %v481 = vld [vmem:[%s3 + $0x8] sm:$0xff]
        %v482 = vld [vmem:[%s4] sm:$0xff]
        %v483 = vld [vmem:[%s4 + $0x8] sm:$0xff]
        %vm484 = vcmask 130048
        %v486 = vsel %vm484, %v472, 0
        %v489 = vsel %vm484, %v473, 0
        %v492 = vsel %vm484, %v474, 0
        %v495 = vsel %vm484, %v475, 0
        %v498 = vsel %vm484, %v476, 0
        %v501 = vsel %vm484, %v477, 0
        %v504 = vsel %vm484, %v478, 0
        %v507 = vsel %vm484, %v479, 0
        %509 = vmatpush.msra.mxu0 0.0
        %510 = vmatpush.msra.mxu0 0.0
        %511 = vmatpush.msra.mxu0 0.0
        %512 = vmatpush.msra.mxu0 0.0
        %513 = vmatpush.msra.mxu0 0.0
        %514 = vmatpush.msra.mxu0 0.0
        %515 = vmatpush.msra.mxu0 0.0
        %516 = vmatpush.msra.mxu0 0.0
        %517 = vmatpush.msra.mxu0 0.0
        %518 = vmatpush.msra.mxu0 0.0
        %519 = vmatpush.msra.mxu0 0.0
        %520 = vmatpush.msra.mxu0 0.0
        %521 = vmatpush.msra.mxu0 0.0
        %522 = vmatpush.msra.mxu0 0.0
        %523 = vmatpush.msra.mxu0 %v483
        %524 = vmatpush.msra.mxu0 %v482
        %525 = vmatmul.f32.gmra.mxu0 %v486
        %v526 = vpop.f32.mrf.mxu0
        %v527 = vadd.f32 0.0, %v526
        %528 = vmatmul.f32.gmra.mxu0 %v489
        %v529 = vpop.f32.mrf.mxu0
        %v530 = vadd.f32 0.0, %v529
        %531 = vmatmul.f32.gmra.mxu0 %v492
        %v532 = vpop.f32.mrf.mxu0
        %v533 = vadd.f32 0.0, %v532
        %534 = vmatmul.f32.gmra.mxu0 %v495
        %v535 = vpop.f32.mrf.mxu0
        %v536 = vadd.f32 0.0, %v535
        %537 = vmatmul.f32.gmra.mxu0 %v498
        %v538 = vpop.f32.mrf.mxu0
        %v539 = vadd.f32 0.0, %v538
        %540 = vmatmul.f32.gmra.mxu0 %v501
        %v541 = vpop.f32.mrf.mxu0
        %v542 = vadd.f32 0.0, %v541
        %543 = vmatmul.f32.gmra.mxu0 %v504
        %v544 = vpop.f32.mrf.mxu0
        %v545 = vadd.f32 0.0, %v544
        %546 = vmatmul.f32.gmra.mxu0 %v507
        %v547 = vpop.f32.mrf.mxu0
        %v548 = vadd.f32 0.0, %v547
        %549 = vdwg.mxu0
        %v551 = vsel %vm484, %v464, 0
        %v554 = vsel %vm484, %v465, 0
        %v557 = vsel %vm484, %v466, 0
        %v560 = vsel %vm484, %v467, 0
        %v563 = vsel %vm484, %v468, 0
        %v566 = vsel %vm484, %v469, 0
        %v569 = vsel %vm484, %v470, 0
        %v572 = vsel %vm484, %v471, 0
        %574 = vmatpush.msra.mxu0 0.0
        %575 = vmatpush.msra.mxu0 0.0
        %576 = vmatpush.msra.mxu0 0.0
        %577 = vmatpush.msra.mxu0 0.0
        %578 = vmatpush.msra.mxu0 0.0
        %579 = vmatpush.msra.mxu0 0.0
        %580 = vmatpush.msra.mxu0 0.0
        %581 = vmatpush.msra.mxu0 0.0
        %582 = vmatpush.msra.mxu0 0.0
        %583 = vmatpush.msra.mxu0 0.0
        %584 = vmatpush.msra.mxu0 0.0
        %585 = vmatpush.msra.mxu0 0.0
        %586 = vmatpush.msra.mxu0 0.0
        %587 = vmatpush.msra.mxu0 0.0
        %588 = vmatpush.msra.mxu0 %v481
        %589 = vmatpush.msra.mxu0 %v480
        %590 = vmatmul.f32.gmra.mxu0 %v551
        %v591 = vpop.f32.mrf.mxu0
        %v592 = vadd.f32 %v527, %v591
        %593 = vmatmul.f32.gmra.mxu0 %v554
        %v594 = vpop.f32.mrf.mxu0
        %v595 = vadd.f32 %v530, %v594
        %596 = vmatmul.f32.gmra.mxu0 %v557
        %v597 = vpop.f32.mrf.mxu0
        %v598 = vadd.f32 %v533, %v597
        %599 = vmatmul.f32.gmra.mxu0 %v560
        %v600 = vpop.f32.mrf.mxu0
        %v601 = vadd.f32 %v536, %v600
        %602 = vmatmul.f32.gmra.mxu0 %v563
        %v603 = vpop.f32.mrf.mxu0
        %v604 = vadd.f32 %v539, %v603
        %605 = vmatmul.f32.gmra.mxu0 %v566
        %v606 = vpop.f32.mrf.mxu0
        %v607 = vadd.f32 %v542, %v606
        %608 = vmatmul.f32.gmra.mxu0 %v569
        %v609 = vpop.f32.mrf.mxu0
        %v610 = vadd.f32 %v545, %v609
        %611 = vmatmul.f32.gmra.mxu0 %v572
        %v612 = vpop.f32.mrf.mxu0
        %v613 = vadd.f32 %v548, %v612
        %614 = vdwg.mxu0
        %v615 = vld [vmem:[%s5] sm:$0x1]
        %v617 = vperm.slane %v615, 0
        %v619 = vadd.f32 %v592, %v617
        %v620 = vadd.f32 %v595, %v617
        %v621 = vadd.f32 %v598, %v617
        %v622 = vadd.f32 %v601, %v617
        %v623 = vadd.f32 %v604, %v617
        %v624 = vadd.f32 %v607, %v617
        %v625 = vadd.f32 %v610, %v617
        %v626 = vadd.f32 %v613, %v617
        %v627 = vmax.f32 %v619, 0.0
        %v628 = vmax.f32 %v620, 0.0
        %v629 = vmax.f32 %v621, 0.0
        %v630 = vmax.f32 %v622, 0.0
        %v631 = vmax.f32 %v623, 0.0
        %v632 = vmax.f32 %v624, 0.0
        %v633 = vmax.f32 %v625, 0.0
        %v634 = vmax.f32 %v626, 0.0
        %v635 = vld [vmem:[%s6] sm:$0xff]
        %v636 = vld [vmem:[%s6 + $0x8] sm:$0xff]
        %v637 = vld [vmem:[%s6 + $0x10] sm:$0xff]
        %v638 = vld [vmem:[%s6 + $0x18] sm:$0xff]
        %v639 = vld [vmem:[%s7] sm:$0x1]
        %v641 = vperm.slane %v639, 0
        %vm643 = vcmask 261120
        %v645 = vsel %vm643, %v627, 0
        %v648 = vsel %vm643, %v628, 0
        %v651 = vsel %vm643, %v629, 0
        %v654 = vsel %vm643, %v630, 0
        %v657 = vsel %vm643, %v631, 0
        %v660 = vsel %vm643, %v632, 0
        %v663 = vsel %vm643, %v633, 0
        %v666 = vsel %vm643, %v634, 0
        %668 = vmatpush.msra.mxu0 0.0
        %669 = vmatpush.msra.mxu0 0.0
        %670 = vmatpush.msra.mxu0 0.0
        %671 = vmatpush.msra.mxu0 0.0
        %672 = vmatpush.msra.mxu0 0.0
        %673 = vmatpush.msra.mxu0 0.0
        %674 = vmatpush.msra.mxu0 0.0
        %675 = vmatpush.msra.mxu0 0.0
        %676 = vmatpush.msra.mxu0 0.0
        %677 = vmatpush.msra.mxu0 0.0
        %678 = vmatpush.msra.mxu0 0.0
        %679 = vmatpush.msra.mxu0 0.0
        %680 = vmatpush.msra.mxu0 %v638
        %681 = vmatpush.msra.mxu0 %v637
        %682 = vmatpush.msra.mxu0 %v636
        %683 = vmatpush.msra.mxu0 %v635
        %684 = vmatmul.f32.gmra.mxu0 %v645
        %v685 = vpop.f32.mrf.mxu0
        %v686 = vadd.f32 %v641, %v685
        %687 = vmatmul.f32.gmra.mxu0 %v648
        %v688 = vpop.f32.mrf.mxu0
        %v689 = vadd.f32 %v641, %v688
        %690 = vmatmul.f32.gmra.mxu0 %v651
        %v691 = vpop.f32.mrf.mxu0
        %v692 = vadd.f32 %v641, %v691
        %693 = vmatmul.f32.gmra.mxu0 %v654
        %v694 = vpop.f32.mrf.mxu0
        %v695 = vadd.f32 %v641, %v694
        %696 = vmatmul.f32.gmra.mxu0 %v657
        %v697 = vpop.f32.mrf.mxu0
        %v698 = vadd.f32 %v641, %v697
        %699 = vmatmul.f32.gmra.mxu0 %v660
        %v700 = vpop.f32.mrf.mxu0
        %v701 = vadd.f32 %v641, %v700
        %702 = vmatmul.f32.gmra.mxu0 %v663
        %v703 = vpop.f32.mrf.mxu0
        %v704 = vadd.f32 %v641, %v703
        %705 = vmatmul.f32.gmra.mxu0 %v666
        %v706 = vpop.f32.mrf.mxu0
        %v707 = vadd.f32 %v641, %v706
        %708 = vdwg.mxu0
        %v709 = vmax.f32 %v686, 0.0
        %v710 = vmax.f32 %v689, 0.0
        %v711 = vmax.f32 %v692, 0.0
        %v712 = vmax.f32 %v695, 0.0
        %v713 = vmax.f32 %v698, 0.0
        %v714 = vmax.f32 %v701, 0.0
        %v715 = vmax.f32 %v704, 0.0
        %v716 = vmax.f32 %v707, 0.0
        %v717 = vld [vmem:[%s8] sm:$0xff]
        %v718 = vld [vmem:[%s8 + $0x8] sm:$0xff]
        %v719 = vld [vmem:[%s8 + $0x10] sm:$0xff]
        %v720 = vld [vmem:[%s8 + $0x18] sm:$0xff]
        %v721 = vld [vmem:[%s9] sm:$0x1]
        %v723 = vperm.slane %v721, 0
        %v726 = vsel %vm643, %v709, 0
        %v729 = vsel %vm643, %v710, 0
        %v732 = vsel %vm643, %v711, 0
        %v735 = vsel %vm643, %v712, 0
        %v738 = vsel %vm643, %v713, 0
        %v741 = vsel %vm643, %v714, 0
        %v744 = vsel %vm643, %v715, 0
        %v747 = vsel %vm643, %v716, 0
        %749 = vmatpush.msra.mxu0 0.0
        %750 = vmatpush.msra.mxu0 0.0
        %751 = vmatpush.msra.mxu0 0.0
        %752 = vmatpush.msra.mxu0 0.0
        %753 = vmatpush.msra.mxu0 0.0
        %754 = vmatpush.msra.mxu0 0.0
        %755 = vmatpush.msra.mxu0 0.0
        %756 = vmatpush.msra.mxu0 0.0
        %757 = vmatpush.msra.mxu0 0.0
        %758 = vmatpush.msra.mxu0 0.0
        %759 = vmatpush.msra.mxu0 0.0
        %760 = vmatpush.msra.mxu0 0.0
        %761 = vmatpush.msra.mxu0 %v720
        %762 = vmatpush.msra.mxu0 %v719
        %763 = vmatpush.msra.mxu0 %v718
        %764 = vmatpush.msra.mxu0 %v717
        %765 = vmatmul.f32.gmra.mxu0 %v726
        %v766 = vpop.f32.mrf.mxu0
        %v767 = vadd.f32 %v723, %v766
        %768 = vmatmul.f32.gmra.mxu0 %v729
        %v769 = vpop.f32.mrf.mxu0
        %v770 = vadd.f32 %v723, %v769
        %771 = vmatmul.f32.gmra.mxu0 %v732
        %v772 = vpop.f32.mrf.mxu0
        %v773 = vadd.f32 %v723, %v772
        %774 = vmatmul.f32.gmra.mxu0 %v735
        %v775 = vpop.f32.mrf.mxu0
        %v776 = vadd.f32 %v723, %v775
        %777 = vmatmul.f32.gmra.mxu0 %v738
        %v778 = vpop.f32.mrf.mxu0
        %v779 = vadd.f32 %v723, %v778
        %780 = vmatmul.f32.gmra.mxu0 %v741
        %v781 = vpop.f32.mrf.mxu0
        %v782 = vadd.f32 %v723, %v781
        %783 = vmatmul.f32.gmra.mxu0 %v744
        %v784 = vpop.f32.mrf.mxu0
        %v785 = vadd.f32 %v723, %v784
        %786 = vmatmul.f32.gmra.mxu0 %v747
        %v787 = vpop.f32.mrf.mxu0
        %v788 = vadd.f32 %v723, %v787
        %789 = vdwg.mxu0
        %v790 = vld [vmem:[%s458] sm:$0xff]
        %v791 = vld [vmem:[%s458 + $0x8] sm:$0xff]
        %v792 = vld [vmem:[%s458 + $0x10] sm:$0xff]
        %v793 = vld [vmem:[%s458 + $0x18] sm:$0xff]
        %v794 = vld [vmem:[%s458 + $0x20] sm:$0xff]
        %v795 = vld [vmem:[%s458 + $0x28] sm:$0xff]
        %v796 = vld [vmem:[%s458 + $0x30] sm:$0xff]
        %v797 = vld [vmem:[%s458 + $0x38] sm:$0xff]
        %v798 = vsub.f32 %v790, %v767
        %v799 = vsub.f32 %v791, %v770
        %v800 = vsub.f32 %v792, %v773
        %v801 = vsub.f32 %v793, %v776
        %v802 = vsub.f32 %v794, %v779
        %v803 = vsub.f32 %v795, %v782
        %v804 = vsub.f32 %v796, %v785
        %v805 = vsub.f32 %v797, %v788
        %s806 = smul.u32 %s24, 64
        %v807 = vlaneseq
        %v808 = vshrl.u32 %v807, 7
        %v809 = vadd.s32 %v808, 8
        %v810 = vadd.s32 %v808, 16
        %v811 = vadd.s32 %v808, 24
        %v812 = vadd.s32 %v808, 32
        %v813 = vadd.s32 %v808, 40
        %v814 = vadd.s32 %v808, 48
        %v815 = vadd.s32 %v808, 56
        %v816 = vstv %s806
        %v817 = vadd.s32 %v816, %v808
        %v818 = vadd.s32 %v816, %v809
        %v819 = vadd.s32 %v816, %v810
        %v820 = vadd.s32 %v816, %v811
        %v821 = vadd.s32 %v816, %v812
        %v822 = vadd.s32 %v816, %v813
        %v823 = vadd.s32 %v816, %v814
        %v824 = vadd.s32 %v816, %v815
        %vm825 = vcmp.lt.s32.totalorder %v817, 200
        %vm826 = vcmp.lt.s32.totalorder %v818, 200
        %vm827 = vcmp.lt.s32.totalorder %v819, 200
        %vm828 = vcmp.lt.s32.totalorder %v820, 200
        %vm829 = vcmp.lt.s32.totalorder %v821, 200
        %vm830 = vcmp.lt.s32.totalorder %v822, 200
        %vm831 = vcmp.lt.s32.totalorder %v823, 200
        %vm832 = vcmp.lt.s32.totalorder %v824, 200
        %v833 = vmul.f32 %v798, %v798
        %v834 = vmul.f32 %v799, %v799
        %v835 = vmul.f32 %v800, %v800
        %v836 = vmul.f32 %v801, %v801
        %v837 = vmul.f32 %v802, %v802
        %v838 = vmul.f32 %v803, %v803
        %v839 = vmul.f32 %v804, %v804
        %v840 = vmul.f32 %v805, %v805
        %v841 = vsel %vm825, %v833, 0.0
        %v842 = vsel %vm826, %v834, 0.0
        %v843 = vsel %vm827, %v835, 0.0
        %v844 = vsel %vm828, %v836, 0.0
        %v845 = vsel %vm829, %v837, 0.0
        %v846 = vsel %vm830, %v838, 0.0
        %v847 = vsel %vm831, %v839, 0.0
        %v848 = vsel %vm832, %v840, 0.0
        %vm849 = vcmask 64512
        %v850 = vsel %vm849, %v841, 0.0
        %v851 = vsel %vm849, %v842, 0.0
        %v852 = vadd.f32 %v850, %v851
        %v853 = vsel %vm849, %v843, 0.0
        %v854 = vadd.f32 %v852, %v853
        %v855 = vsel %vm849, %v844, 0.0
        %v856 = vadd.f32 %v854, %v855
        %v857 = vsel %vm849, %v845, 0.0
        %v858 = vadd.f32 %v856, %v857
        %v859 = vsel %vm849, %v846, 0.0
        %v860 = vadd.f32 %v858, %v859
        %v861 = vsel %vm849, %v847, 0.0
        %v862 = vadd.f32 %v860, %v861
        %v863 = vsel %vm849, %v848, 0.0
        %v864 = vadd.f32 %v862, %v863
        %865 = vadd.xlane.f32.xlu0 %v864
        %v866 = vpop.xlane.xlu0 %865
        %v867 = vrot.slane %v866, 4
        %v868 = vadd.f32 %v866, %v867
        %v869 = vrot.slane %v868, 2
        %v870 = vadd.f32 %v868, %v869
        %v871 = vrot.slane %v870, 1
        %v872 = vadd.f32 %v870, %v871
        %s873 = vtos %v872
        %v874 = vstv %s873
        %875 = vst [vmem:[%s421] sm:$0xff] %v874
        %s876 = sand.u32 %s257, 1
        %s877 = scalar_lea.sflag [#allocation3], %s876
        %s878 = sand.u32 %s257, 1
        %s879 = smul.addr %s878, 8
        %s880 = scalar_lea.vmem [#allocation2], %s879
        // Predicated region
        $region61: #{tpu_custom_call.1} parent=59 // pred_check
          %p881 = pneg %p267
        $region62: #{tpu_custom_call.1} parent=59 // pred_check_branch
          %883 = sbr.rel (%p881) target = $region64
        $region63: #{tpu_custom_call.1} parent=59 // pred_region
          %885 = vsyncadd %s877, 0
          %s886 = smul.addr %s24, 8
          %s887 = scalar_lea.hbm %s10, %s886
          %s889 = sshll.u32 %s880, 4
          %s890 = int_to_ptr.vmem [resolvable:$true] %s889
          %s891 = sshll.u32 %s887, 4
          %s892 = int_to_ptr.hbm [resolvable:$true] %s891
          %894 = dma.vmem_to_hbm [thread:$0]  %s890, 128, %s892, %s877
        $region64: #{tpu_custom_call.1} parent=59 // pred_fallthru
          _
      $region60: #{tpu_custom_call.1} parent=5 // pred_fallthru
        _
      %p895 = scmp.le.s32.totalorder 2, %s19
      // Predicated region
      $region65: #{tpu_custom_call.1} parent=5 // pred_check
        %p896 = pneg %p895
      $region66: #{tpu_custom_call.1} parent=5 // pred_check_branch
        %898 = sbr.rel (%p896) target = $region68
      $region67: #{tpu_custom_call.1} parent=5 // pred_region
        %s899 = ssub.s32 %s19, 2
        // Predicated region
        $region69: #{tpu_custom_call.1} parent=67 // pred_check
          %p900 = pneg %p273
        $region70: #{tpu_custom_call.1} parent=67 // pred_check_branch
          %902 = sbr.rel (%p900) target = $region72
        $region71: #{tpu_custom_call.1} parent=67 // pred_region
          %s903 = sand.u32 %s258, 1
          %s904 = scalar_lea.sflag [#allocation3], %s903
          %s905 = sand.u32 %s258, 1
          %s906 = smul.addr %s905, 8
          %s907 = scalar_lea.vmem [#allocation2], %s906
          %909 = dma.done %s904, 128
        $region72: #{tpu_custom_call.1} parent=67 // pred_fallthru
          _
      $region68: #{tpu_custom_call.1} parent=5 // pred_fallthru
        _
    $region6: #{tpu_custom_call.1} parent=1 // loop_footer
      %s23 = sadd.s32 1, %s19
    $region7: #{tpu_custom_call.1} parent=1 // loop_footer_branch
      %18 = sbr.rel target = $region3
    $region8: #{tpu_custom_call.1} parent=1 // loop_exit
      _
    %910 = vsyncpa [#allocation3], 1
    %s911 = scalar_lea.sflag [#allocation3], 1
    %912 = vsyncpa %s911, 1

</llo_original>
